<compile_context>
chip_gen: v6e
topology: v6e:2x2x1
jax: 0.10.0
libtpu: 0.0.40
codegen_flags: <defaults>
</compile_context>

<pallas_src>
import functools

import jax
import jax.numpy as jnp
from jax.experimental import pallas as pl
from jax.experimental.pallas import tpu as pltpu


def _round_up(x, n):
    return ((x + n - 1) // n) * n


def _maxout_kernel(x_ref, w_ref, b_ref, o_ref, *, m_pad, pool_size, compute_dtype):
    # x_ref: (TB, d_in); w_ref: (d_in, k*m_pad) slab-major, lane-padded;
    # b_ref: (1, k*m_pad) f32, same layout; o_ref: (TB, m_pad) lane-dense.
    x = x_ref[...].astype(compute_dtype)  # in-kernel cast: no extra HBM pass over x

    def slab(j):
        # Static ref slices -> lane-aligned (d_in, m_pad)/(1, m_pad) views.
        wj = w_ref[:, j * m_pad:(j + 1) * m_pad]
        bj = b_ref[:, j * m_pad:(j + 1) * m_pad]
        return jnp.dot(x, wj, preferred_element_type=jnp.float32) + bj

    # Running max over pool members: only one (TB, m_pad) f32 slab live at a time.
    acc = slab(0)
    for j in range(1, pool_size):
        acc = jnp.maximum(acc, slab(j))

    o_ref[...] = acc.astype(o_ref.dtype)


def _choose_tiling(bsz, d_in, m_pad, pool_size, x_itemsize, w_itemsize, block_b):
    """Pick the batch tile TB and the scoped VMEM limit per chip generation."""
    try:
        info = pltpu.get_tpu_info()
        phys = int(getattr(info, "vmem_capacity_bytes", 128 << 20))
    except Exception:  # pragma: no cover - conservative fallback (v7x per-core VMEM)
        phys = 64 << 20
    # Leave headroom for compiler scratch: 48 MiB on v7x (64 MiB physical),
    # 96 MiB on v5e/v6e (128 MiB physical).
    cap = min((phys * 3) // 4, 100 << 20)

    kmp = pool_size * m_pad
    # W/b are grid-invariant but the auto-pipeliner still double-buffers them.
    # TODO(synk): pl.Buffered(1) on W/b would halve this term.
    resident = 2 * w_itemsize * d_in * kmp + 2 * 4 * kmp
    # Per batch row: x tile (double-buffered) + out tile (double-buffered, f32)
    # + in-kernel acc/current-slab f32 intermediates.
    per_row = 2 * x_itemsize * d_in + 2 * 4 * m_pad + 2 * 4 * m_pad

    slack = 4 << 20
    usable = max(cap - resident - slack, 8 * per_row)
    tb_vmem = max(8, (usable // per_row) // 8 * 8)

    # Guarantee >= 2 grid steps so dimension_semantics=("parallel",) can shard
    # the batch across v7x's two TensorCores (no effect on v5e/v6e).
    tb_half = _round_up((bsz + 1) // 2, 8)

    tb = max(8, min(block_b, tb_vmem, tb_half))
    if tb >= 256:
        tb = (tb // 256) * 256  # MXU-native row granularity on v6e/v7x

    footprint = resident + tb * per_row + slack
    vmem_limit = int(min(max(footprint, 32 << 20), cap))
    return tb, vmem_limit


def maxout_forward(x, w, b, d_out, pool_size, *, block_b=1024,
                   compute_dtype=jnp.bfloat16):
    """Maxout forward.

    x: (..., d_in)
    w: (d_in, d_out*pool_size)   -- PyTorch Linear weight, transposed
    b: (d_out*pool_size,)
    Column order of w/b is the PyTorch one (channel c = g*pool_size + j).
    """
    orig_shape = x.shape
    d_in = orig_shape[-1]
    m_pad = _round_up(d_out, 128)       # lane-dense output / lane-aligned slabs
    kmp = pool_size * m_pad

    x2d = x.reshape(-1, d_in)
    bsz = x2d.shape[0]

    # Trace-time weight re-layout (amortized: weights are constants):
    #   new column j*m_pad + g  <-  old column g*pool_size + j, zero for g >= d_out.
    w_r = w.reshape(d_in, d_out, pool_size)
    w_r = jnp.transpose(w_r, (2, 0, 1))                        # (k, d_in, m)
    w_r = jnp.pad(w_r, ((0, 0), (0, 0), (0, m_pad - d_out)))   # (k, d_in, m_pad)
    w_p = jnp.transpose(w_r, (1, 0, 2)).reshape(d_in, kmp).astype(compute_dtype)

    b_r = jnp.pad(b.reshape(d_out, pool_size).T, ((0, 0), (0, m_pad - d_out)))
    b_p = b_r.reshape(1, kmp).astype(jnp.float32)              # bias added in f32

    tb, vmem_limit = _choose_tiling(
        bsz, d_in, m_pad, pool_size,
        x_itemsize=x2d.dtype.itemsize, w_itemsize=w_p.dtype.itemsize,
        block_b=block_b)

    # No wrapper-side jnp.pad of x: Pallas clamps the edge block (OOB output
    # rows are dropped; each output row depends only on its own input row).
    grid = (pl.cdiv(bsz, tb),)

    kernel = functools.partial(_maxout_kernel, m_pad=m_pad,
                               pool_size=pool_size, compute_dtype=compute_dtype)

    out = pl.pallas_call(
        kernel,
        out_shape=jax.ShapeDtypeStruct((bsz, m_pad), x.dtype),
        grid_spec=pltpu.PrefetchScalarGridSpec(
            num_scalar_prefetch=0,
            grid=grid,
            in_specs=[
                pl.BlockSpec((tb, d_in), lambda i: (i, 0)),    # x: tiled over batch
                pl.BlockSpec((d_in, kmp), lambda i: (0, 0)),   # W: VMEM-resident
                pl.BlockSpec((1, kmp), lambda i: (0, 0)),      # b: VMEM-resident
            ],
            out_specs=pl.BlockSpec((tb, m_pad), lambda i: (i, 0)),
        ),
        compiler_params=pltpu.CompilerParams(
            dimension_semantics=("parallel",),   # shard batch across TCs on v7x
            vmem_limit_bytes=vmem_limit,
        ),
    )(x2d, w_p, b_p)

    out = out[:, :d_out]                         # drop lane padding
    return out.reshape(*orig_shape[:-1], d_out)


def maxout_reference(x, w, b, d_out, pool_size):
    y = jnp.einsum("...i,ij->...j", x, w) + b
    y = y.reshape(*y.shape[:-1], d_out, pool_size)
    return jnp.max(y, axis=-1)


if __name__ == "__main__":
    # Small shapes consistent with the module: d_in=32, d_out(m)=16, k=4.
    # seq=9 makes bsz=18, which is NOT a multiple of the batch tile -> also
    # exercises the clamped edge-block path.
    d_in, d_out, pool_size = 32, 16, 4
    batch, seq = 2, 9

    key = jax.random.PRNGKey(0)
    kx, kw, kb = jax.random.split(key, 3)

    x = jax.random.normal(kx, (batch, seq, d_in), dtype=jnp.float32)
    # PyTorch weight is (m*k, d_in); we store the transpose (d_in, m*k).
    w = jax.random.normal(kw, (d_in, d_out * pool_size), dtype=jnp.float32) * 0.1
    b = jax.random.normal(kb, (d_out * pool_size,), dtype=jnp.float32) * 0.1

    ref = maxout_reference(x, w, b, d_out, pool_size)

    # Exact path (f32 weights/activations): validates layout, permutation,
    # lane padding and edge-block clamping bit-for-bit vs. the old behaviour.
    out_f32 = jax.block_until_ready(
        maxout_forward(x, w, b, d_out, pool_size, compute_dtype=jnp.float32))
    assert out_f32.shape == (batch, seq, d_out), out_f32.shape
    assert jnp.allclose(out_f32, ref, atol=1e-5, rtol=1e-5), "f32 path mismatch"

    # Default fast path (bf16 MXU, f32 accumulate): relaxed tolerance for bf16.
    out = jax.block_until_ready(maxout_forward(x, w, b, d_out, pool_size))
    assert out.shape == (batch, seq, d_out), out.shape
    assert jnp.allclose(out, ref, atol=3e-2, rtol=3e-2), "bf16 path mismatch"

    print("KERNEL_OK")
</pallas_src>

<mosaic_0001>
module attributes {stable_mosaic.version = 11 : i64} {
  func.func @_maxout_kernel(%arg0: i32, %arg1: memref<16x32xf32, #tpu.memory_space<vmem>>, %arg2: memref<32x512xf32, #tpu.memory_space<vmem>>, %arg3: memref<1x512xf32, #tpu.memory_space<vmem>>, %arg4: memref<16x128xf32, #tpu.memory_space<vmem>>) attributes {dimension_semantics = [#tpu.dimension_semantics<parallel>], iteration_bounds = array<i64: 2>, scalar_prefetch = 0 : i64, scratch_operands = 0 : i64, tpu.core_type = #tpu.core_type<tc>, window_params = [{transform_indices = @transform_0, window_bounds = array<i64: 16, 32>}, {pipeline_mode = #tpu.pipeline_mode<synchronous>, transform_indices = @transform_1, window_bounds = array<i64: 32, 512>}, {pipeline_mode = #tpu.pipeline_mode<synchronous>, transform_indices = @transform_2, window_bounds = array<i64: 1, 512>}, {transform_indices = @transform_3, window_bounds = array<i64: 16, 128>}]} {
    %c0 = arith.constant 0 : index
    %c0_0 = arith.constant 0 : index
    %0 = vector.load %arg1[%c0, %c0_0] : memref<16x32xf32, #tpu.memory_space<vmem>>, vector<16x32xf32>
    %c0_1 = arith.constant 0 : index
    %c0_2 = arith.constant 0 : index
    %1 = vector.load %arg2[%c0_1, %c0_2] : memref<32x512xf32, #tpu.memory_space<vmem>>, vector<32x128xf32>
    %c0_3 = arith.constant 0 : index
    %c0_4 = arith.constant 0 : index
    %2 = vector.load %arg3[%c0_3, %c0_4] : memref<1x512xf32, #tpu.memory_space<vmem>>, vector<1x128xf32>
    %cst = arith.constant dense<0.000000e+00> : vector<16x128xf32>
    %3 = tpu.matmul %0, %1, %cst {dimension_numbers = #tpu.dot_dimension_numbers<[1], [0], [0], [1], [0, 0, 1, 1], [], []>} : vector<16x32xf32>, vector<32x128xf32>, vector<16x128xf32> -> vector<16x128xf32>
    %4 = vector.broadcast %2 : vector<1x128xf32> to vector<16x128xf32>
    %5 = arith.addf %3, %4 : vector<16x128xf32>
    %c0_5 = arith.constant 0 : index
    %c128 = arith.constant 128 : index
    %6 = vector.load %arg2[%c0_5, %c128] : memref<32x512xf32, #tpu.memory_space<vmem>>, vector<32x128xf32>
    %c0_6 = arith.constant 0 : index
    %c128_7 = arith.constant 128 : index
    %7 = vector.load %arg3[%c0_6, %c128_7] : memref<1x512xf32, #tpu.memory_space<vmem>>, vector<1x128xf32>
    %cst_8 = arith.constant dense<0.000000e+00> : vector<16x128xf32>
    %8 = tpu.matmul %0, %6, %cst_8 {dimension_numbers = #tpu.dot_dimension_numbers<[1], [0], [0], [1], [0, 0, 1, 1], [], []>} : vector<16x32xf32>, vector<32x128xf32>, vector<16x128xf32> -> vector<16x128xf32>
    %9 = vector.broadcast %7 : vector<1x128xf32> to vector<16x128xf32>
    %10 = arith.addf %8, %9 : vector<16x128xf32>
    %11 = arith.maximumf %5, %10 : vector<16x128xf32>
    %c0_9 = arith.constant 0 : index
    %c256 = arith.constant 256 : index
    %12 = vector.load %arg2[%c0_9, %c256] : memref<32x512xf32, #tpu.memory_space<vmem>>, vector<32x128xf32>
    %c0_10 = arith.constant 0 : index
    %c256_11 = arith.constant 256 : index
    %13 = vector.load %arg3[%c0_10, %c256_11] : memref<1x512xf32, #tpu.memory_space<vmem>>, vector<1x128xf32>
    %cst_12 = arith.constant dense<0.000000e+00> : vector<16x128xf32>
    %14 = tpu.matmul %0, %12, %cst_12 {dimension_numbers = #tpu.dot_dimension_numbers<[1], [0], [0], [1], [0, 0, 1, 1], [], []>} : vector<16x32xf32>, vector<32x128xf32>, vector<16x128xf32> -> vector<16x128xf32>
    %15 = vector.broadcast %13 : vector<1x128xf32> to vector<16x128xf32>
    %16 = arith.addf %14, %15 : vector<16x128xf32>
    %17 = arith.maximumf %11, %16 : vector<16x128xf32>
    %c0_13 = arith.constant 0 : index
    %c384 = arith.constant 384 : index
    %18 = vector.load %arg2[%c0_13, %c384] : memref<32x512xf32, #tpu.memory_space<vmem>>, vector<32x128xf32>
    %c0_14 = arith.constant 0 : index
    %c384_15 = arith.constant 384 : index
    %19 = vector.load %arg3[%c0_14, %c384_15] : memref<1x512xf32, #tpu.memory_space<vmem>>, vector<1x128xf32>
    %cst_16 = arith.constant dense<0.000000e+00> : vector<16x128xf32>
    %20 = tpu.matmul %0, %18, %cst_16 {dimension_numbers = #tpu.dot_dimension_numbers<[1], [0], [0], [1], [0, 0, 1, 1], [], []>} : vector<16x32xf32>, vector<32x128xf32>, vector<16x128xf32> -> vector<16x128xf32>
    %21 = vector.broadcast %19 : vector<1x128xf32> to vector<16x128xf32>
    %22 = arith.addf %20, %21 : vector<16x128xf32>
    %23 = arith.maximumf %17, %22 : vector<16x128xf32>
    %c0_17 = arith.constant 0 : index
    %c0_18 = arith.constant 0 : index
    %24 = vector.load %arg4[%c0_17, %c0_18] : memref<16x128xf32, #tpu.memory_space<vmem>>, vector<16x128xf32>
    tpu.vector_store %arg4[%c0_17, %c0_18], %23 {strides = array<i32>} : memref<16x128xf32, #tpu.memory_space<vmem>>, vector<16x128xf32>,
    return
  }
  func.func @transform_0(%arg0: i32) -> (i32, i32) {
    %c0_i32 = arith.constant 0 : i32
    %c0_i32_0 = arith.constant 0 : i32
    return %arg0, %c0_i32 : i32, i32
  }
  func.func @transform_1(%arg0: i32) -> (i32, i32) {
    %c0_i32 = arith.constant 0 : i32
    %c0_i32_0 = arith.constant 0 : i32
    %c0_i32_1 = arith.constant 0 : i32
    return %c0_i32, %c0_i32_0 : i32, i32
  }
  func.func @transform_2(%arg0: i32) -> (i32, i32) {
    %c0_i32 = arith.constant 0 : i32
    %c0_i32_0 = arith.constant 0 : i32
    %c0_i32_1 = arith.constant 0 : i32
    return %c0_i32, %c0_i32_0 : i32, i32
  }
  func.func @transform_3(%arg0: i32) -> (i32, i32) {
    %c0_i32 = arith.constant 0 : i32
    %c0_i32_0 = arith.constant 0 : i32
    return %arg0, %c0_i32 : i32, i32
  }
}

</mosaic_0001>

<llo_original>
// kernel: tpu_custom_call.1
$region0: #{tpu_custom_call.1}
  #allocation0 [shape = 'u32[]', space=smem, size = 0x4, offset = 0x4, fixed_abs, tag = 'smem constant byte address 0x4 - core index']
  #allocation1 [shape = 'u32[144,128]{1,0:T(1,128)}', space=vmem, size = 0x12000, scoped, tag = 'internal scratch']
  %s0 = inlined_call_operand.hbm [shape: f32[18,32], index: 0, kind: input, shape index: {}]
  %s1 = inlined_call_operand.hbm [shape: f32[32,512], index: 1, kind: input, shape index: {}]
  %s2 = inlined_call_operand.hbm [shape: f32[1,512], index: 2, kind: input, shape index: {}]
  %s3 = inlined_call_operand.hbm [shape: f32[18,128], index: 3, kind: output, shape index: {}]
  %s4 = sld [smem:[#allocation0]]
  $region57: #{tpu_custom_call.1} parent=0
    _
  %s6 = ssub.s32 1, %s4
  %s7 = scalar_select 0, %s6, %s4
  $region1: #{tpu_custom_call.1} parent=0
    #allocation2 [shape = 'u8[16384]{0}', space=vmem, size = 0x4000, scoped, tag = 'input window, operand 0']
    #allocation3 [shape = 's32[2]{0}', space=sflag, size = 0x8, scoped, tag = 'scoped memory for tpu_custom_call.1']
    #allocation4 [shape = 's32[2]{0}', space=sflag, size = 0x8, scoped, tag = 'scoped memory for tpu_custom_call.1']
    #allocation5 [shape = 'u8[65536]{0}', space=vmem, size = 0x10000, scoped, tag = 'input window, operand 1, single buffered']
    #allocation6 [shape = 's32[1]{0}', space=sflag, size = 0x4, scoped, tag = 'scoped memory for tpu_custom_call.1']
    #allocation7 [shape = 'u8[2048]{0}', space=vmem, size = 0x800, scoped, tag = 'input window, operand 2, single buffered']
    #allocation8 [shape = 'u8[16384]{0}', space=vmem, size = 0x4000, scoped, tag = 'output window, operand 0']
    %8 = vsyncpa [#allocation3], 0
    %s9 = scalar_lea.sflag [#allocation3], 1
    %10 = vsyncpa %s9, 0
    %11 = vsyncpa [#allocation6], 0
    %12 = vsyncpa [#allocation4], 0
    %s13 = scalar_lea.sflag [#allocation4], 1
    %14 = vsyncpa %s13, 0
    loop: start=0, step=1, limit=4
    $region2: #{tpu_custom_call.1} parent=1 // loop_pre_header
      _
    $region3: #{tpu_custom_call.1} parent=1 // loop_header
      %s16 = sphi 0, %s20
      %p17 = scmp.ge.s32.totalorder %s16, 4
      %s26 = sphi 0, %s28
      %s29 = sphi 0, %s26
      %s30 = sphi 0, %s29
      %s46 = sphi 0, %s30
      %s50 = sphi 0, %s50
      %s52 = sphi 0, %s50
      %s53 = sphi 0, %s52
      %s67 = sphi 0, %s53
      %s71 = sphi 0, %s71
      %s73 = sphi 0, %s71
      %s74 = sphi 0, %s73
      %s88 = sphi 0, %s74
      %s94 = sphi 0, %s96
      %s97 = sphi 0, %s94
      %s98 = sphi 0, %s97
      %s114 = sphi 0, %s98
    $region4: #{tpu_custom_call.1} parent=1 // loop_header_branch
      %19 = sbr.rel (%p17) target = $region8
    $region5: #{tpu_custom_call.1} parent=1 // loop_body
      %s21 = ssub.s32 %s16, 1
      %s22 = ssub.s32 %s16, 2
      %s23 = sadd.s32 %s16, 1
      %s24 = ssub.s32 %s16, %s23
      %p25 = scmp.eq.s32.totalorder %s24, 0
      %s27 = sadd.s32 %s26, 1
      %s28 = scalar_select %p25, %s26, %s27
      %p31 = pneg %p25
      %p32 = scmp.eq.s32.totalorder %s16, 1
      %p33 = por %p31, %p32
      %p34 = scmp.ne.s32.totalorder %s26, %s29
      %p35 = scmp.eq.s32.totalorder %s16, 0
      %p36 = por %p34, %p35
      %p37 = scmp.ne.s32.totalorder %s26, %s29
      %p38 = scmp.eq.s32.totalorder %s21, 1
      %p39 = por %p37, %p38
      %p40 = scmp.ne.s32.totalorder %s29, %s30
      %p41 = scmp.eq.s32.totalorder %s21, 0
      %p42 = por %p40, %p41
      %p43 = scmp.ne.s32.totalorder %s29, %s30
      %p44 = scmp.eq.s32.totalorder %s22, 1
      %p45 = por %p43, %p44
      %p47 = scmp.ne.s32.totalorder %s30, %s46
      %p48 = scmp.eq.s32.totalorder %s22, 0
      %p49 = por %p47, %p48
      %s51 = sadd.s32 %s50, 1
      %p54 = scmp.eq.s32.totalorder %s16, 1
      %p55 = scmp.ne.s32.totalorder %s50, %s52
      %p56 = scmp.eq.s32.totalorder %s16, 0
      %p57 = por %p55, %p56
      %p58 = scmp.ne.s32.totalorder %s50, %s52
      %p59 = scmp.eq.s32.totalorder %s21, 1
      %p60 = por %p58, %p59
      %p61 = scmp.ne.s32.totalorder %s52, %s53
      %p62 = scmp.eq.s32.totalorder %s21, 0
      %p63 = por %p61, %p62
      %p64 = scmp.ne.s32.totalorder %s52, %s53
      %p65 = scmp.eq.s32.totalorder %s22, 1
      %p66 = por %p64, %p65
      %p68 = scmp.ne.s32.totalorder %s53, %s67
      %p69 = scmp.eq.s32.totalorder %s22, 0
      %p70 = por %p68, %p69
      %s72 = sadd.s32 %s71, 1
      %p75 = scmp.eq.s32.totalorder %s16, 1
      %p76 = scmp.ne.s32.totalorder %s71, %s73
      %p77 = scmp.eq.s32.totalorder %s16, 0
      %p78 = por %p76, %p77
      %p79 = scmp.ne.s32.totalorder %s71, %s73
      %p80 = scmp.eq.s32.totalorder %s21, 1
      %p81 = por %p79, %p80
      %p82 = scmp.ne.s32.totalorder %s73, %s74
      %p83 = scmp.eq.s32.totalorder %s21, 0
      %p84 = por %p82, %p83
      %p85 = scmp.ne.s32.totalorder %s73, %s74
      %p86 = scmp.eq.s32.totalorder %s22, 1
      %p87 = por %p85, %p86
      %p89 = scmp.ne.s32.totalorder %s74, %s88
      %p90 = scmp.eq.s32.totalorder %s22, 0
      %p91 = por %p89, %p90
      %s92 = ssub.s32 %s16, %s23
      %p93 = scmp.eq.s32.totalorder %s92, 0
      %s95 = sadd.s32 %s94, 1
      %s96 = scalar_select %p93, %s94, %s95
      %p99 = pneg %p93
      %p100 = scmp.eq.s32.totalorder %s16, 1
      %p101 = por %p99, %p100
      %p102 = scmp.ne.s32.totalorder %s94, %s97
      %p103 = scmp.eq.s32.totalorder %s16, 0
      %p104 = por %p102, %p103
      %p105 = scmp.ne.s32.totalorder %s94, %s97
      %p106 = scmp.eq.s32.totalorder %s21, 1
      %p107 = por %p105, %p106
      %p108 = scmp.ne.s32.totalorder %s97, %s98
      %p109 = scmp.eq.s32.totalorder %s21, 0
      %p110 = por %p108, %p109
      %p111 = scmp.ne.s32.totalorder %s97, %s98
      %p112 = scmp.eq.s32.totalorder %s22, 1
      %p113 = por %p111, %p112
      %p115 = scmp.ne.s32.totalorder %s98, %s114
      %p116 = scmp.eq.s32.totalorder %s22, 0
      %p117 = por %p115, %p116
      %p118 = scmp.le.s32.totalorder 1, %s16
      %p119 = scmp.lt.s32.totalorder %s16, 3
      %p120 = pnand %p118, %p119
      %p121 = pneg %p120
      // Predicated region
      $region9: #{tpu_custom_call.1} parent=5 // pred_check
        _
      $region10: #{tpu_custom_call.1} parent=5 // pred_check_branch
        %123 = sbr.rel (%p120) target = $region12
      $region11: #{tpu_custom_call.1} parent=5 // pred_region
        %s124 = ssub.s32 %s16, 1
        // Predicated region
        $region13: #{tpu_custom_call.1} parent=11 // pred_check
          %p125 = pneg %p63
        $region14: #{tpu_custom_call.1} parent=11 // pred_check_branch
          %127 = sbr.rel (%p125) target = $region16
        $region15: #{tpu_custom_call.1} parent=11 // pred_region
          %s129 = ssub.s32 2048, 2048
          %130 = vsyncadd [#allocation6], %s129
          %s131 = sshll.u32 [#allocation5], 4
          %s132 = int_to_ptr.vmem [resolvable:$true] %s131
          %137 = dma.hbm_to_vmem [thread:$0]  %s1, 2048, %s132, [#allocation6], 512, 512, 32
        $region16: #{tpu_custom_call.1} parent=11 // pred_fallthru
          _
        // Predicated region
        $region17: #{tpu_custom_call.1} parent=11 // pred_check
          %p138 = pneg %p84
        $region18: #{tpu_custom_call.1} parent=11 // pred_check_branch
          %140 = sbr.rel (%p138) target = $region20
        $region19: #{tpu_custom_call.1} parent=11 // pred_region
          %s142 = ssub.s32 64, 64
          %143 = vsyncadd [#allocation6], %s142
          %s145 = sshll.u32 [#allocation7], 4
          %s146 = int_to_ptr.vmem [resolvable:$true] %s145
          %148 = dma.hbm_to_vmem [thread:$0]  %s2, 64, %s146, [#allocation6]
        $region20: #{tpu_custom_call.1} parent=11 // pred_fallthru
          _
      $region12: #{tpu_custom_call.1} parent=5 // pred_fallthru
        _
      %p149 = scmp.lt.s32.totalorder %s16, 2
      // Predicated region
      $region21: #{tpu_custom_call.1} parent=5 // pred_check
        %p150 = pneg %p149
      $region22: #{tpu_custom_call.1} parent=5 // pred_check_branch
        %152 = sbr.rel (%p150) target = $region24
      $region23: #{tpu_custom_call.1} parent=5 // pred_region
        // Predicated region
        $region25: #{tpu_custom_call.1} parent=23 // pred_check
          %p153 = pneg %p36
        $region26: #{tpu_custom_call.1} parent=23 // pred_check_branch
          %155 = sbr.rel (%p153) target = $region28
        $region27: #{tpu_custom_call.1} parent=23 // pred_region
          %s156 = sand.u32 %s26, 1
          %s157 = scalar_lea.sflag [#allocation3], %s156
          %s158 = sand.u32 %s26, 1
          %s159 = smul.addr %s158, 16
          %s160 = scalar_lea.vmem [#allocation2], %s159
          %s161 = smul.u32 2, %s16
          %s162 = ssub.s32 3, %s161
          %p163 = scmp.lt.s32.totalorder %s162, 2
          %s164 = scalar_select %p163, %s162, 2
          %s165 = smul.u32 128, %s164
          %s167 = ssub.s32 256, %s165
          %168 = vsyncadd %s157, %s167
          %p169 = scmp.ne.s32.totalorder 0, %s165
          %s170 = smul.addr %s161, 128
          %s171 = scalar_lea.hbm %s0, %s170
          %s172 = smul.u32 8, %s164
          %s173 = sshll.u32 %s160, 4
          %s174 = int_to_ptr.vmem [resolvable:$true] %s173
          %s175 = sshll.u32 %s172, 4
          %179 = dma.hbm_to_vmem [thread:$0]  (%p169), %s171, %s175, %s174, %s157, 128, 128, 8
        $region28: #{tpu_custom_call.1} parent=23 // pred_fallthru
          _
      $region24: #{tpu_custom_call.1} parent=5 // pred_fallthru
        _
      %p180 = scmp.le.s32.totalorder 1, %s16
      %p181 = scmp.lt.s32.totalorder %s16, 3
      %p182 = pnand %p180, %p181
      %p183 = pneg %p182
      // Predicated region
      $region29: #{tpu_custom_call.1} parent=5 // pred_check
        _
      $region30: #{tpu_custom_call.1} parent=5 // pred_check_branch
        %185 = sbr.rel (%p182) target = $region32
      $region31: #{tpu_custom_call.1} parent=5 // pred_region
        %s186 = ssub.s32 %s16, 1
        %s187 = sand.u32 %s29, 1
        %s188 = scalar_lea.sflag [#allocation3], %s187
        %s189 = sand.u32 %s29, 1
        %s190 = smul.addr %s189, 16
        %s191 = scalar_lea.vmem [#allocation2], %s190
        // Predicated region
        $region33: #{tpu_custom_call.1} parent=31 // pred_check
          %p192 = pneg %p42
        $region34: #{tpu_custom_call.1} parent=31 // pred_check_branch
          %194 = sbr.rel (%p192) target = $region36
        $region35: #{tpu_custom_call.1} parent=31 // pred_region
          %195 = dma.done %s188, 256
        $region36: #{tpu_custom_call.1} parent=31 // pred_fallthru
          _
        // Predicated region
        $region37: #{tpu_custom_call.1} parent=31 // pred_check
          %p196 = pneg %p63
        $region38: #{tpu_custom_call.1} parent=31 // pred_check_branch
          %198 = sbr.rel (%p196) target = $region40
        $region39: #{tpu_custom_call.1} parent=31 // pred_region
          %199 = dma.done [#allocation6], 2048
        $region40: #{tpu_custom_call.1} parent=31 // pred_fallthru
          _
        // Predicated region
        $region41: #{tpu_custom_call.1} parent=31 // pred_check
          %p200 = pneg %p84
        $region42: #{tpu_custom_call.1} parent=31 // pred_check_branch
          %202 = sbr.rel (%p200) target = $region44
        $region43: #{tpu_custom_call.1} parent=31 // pred_region
          %203 = dma.done [#allocation6], 64
        $region44: #{tpu_custom_call.1} parent=31 // pred_fallthru
          _
        %s204 = sand.u32 %s29, 1
        %s205 = scalar_lea.sflag [#allocation3], %s204
        %s206 = sand.u32 %s29, 1
        %s207 = smul.addr %s206, 16
        %s208 = scalar_lea.vmem [#allocation2], %s207
        %p209 = pneg %p42
        %p210 = pneg %p39
        %p211 = pneg %p63
        %p212 = pneg %p60
        %p213 = pneg %p84
        %p214 = pneg %p81
        %p215 = pneg %p110
        %p216 = pneg %p107
        %s217 = sand.u32 %s97, 1
        %s218 = scalar_lea.sflag [#allocation4], %s217
        %s219 = sand.u32 %s97, 1
        %s220 = smul.addr %s219, 16
        %s221 = scalar_lea.vmem [#allocation8], %s220
        %s222 = smul.u32 2, %s21
        %s223 = ssub.s32 3, %s222
        %p224 = scmp.lt.s32.totalorder %s223, 2
        %s225 = scalar_select %p224, %s223, 2
        %s226 = smul.u32 128, %s225
        %s227 = smul.u32 2, %s21
        %s228 = ssub.s32 3, %s227
        %p229 = scmp.lt.s32.totalorder %s228, 2
        %s230 = scalar_select %p229, %s228, 2
        %s231 = smul.u32 128, %s230
        %v232 = vld [vmem:[%s191] sm:$0xff]
        %v233 = vld [vmem:[%s191 + $0x8] sm:$0xff]
        %v234 = vld [vmem:[#allocation5] sm:$0xff]
        %v235 = vld [vmem:[#allocation5 + $0x20] sm:$0xff]
        %v236 = vld [vmem:[#allocation5 + $0x40] sm:$0xff]
        %v237 = vld [vmem:[#allocation5 + $0x60] sm:$0xff]
        %v238 = vld [vmem:[#allocation7] sm:$0x1]
        %v240 = vlaneseq
        %v241 = vshrl.u32 %v240, 7
        %v242 = vsub.s32 0, %v241
        %v243 = vrot.slane %v238, %v242
        %vm245 = vcmask 261120
        %v247 = vsel %vm245, %v232, 0
        %v250 = vsel %vm245, %v233, 0
        %252 = vmatprep.subr.mxu0 0.0
        %253 = vmatpush1.msra.mxu0 0.0
        %254 = vmatprep.subr.mxu0 0.0
        %255 = vmatpush1.msra.mxu0 0.0
        %256 = vmatprep.subr.mxu0 0.0
        %257 = vmatpush1.msra.mxu0 0.0
        %258 = vmatprep.subr.mxu0 0.0
        %259 = vmatpush1.msra.mxu0 0.0
        %260 = vmatprep.subr.mxu0 0.0
        %261 = vmatpush1.msra.mxu0 0.0
        %262 = vmatprep.subr.mxu0 0.0
        %263 = vmatpush1.msra.mxu0 0.0
        %264 = vmatprep.subr.mxu0 0.0
        %265 = vmatpush1.msra.mxu0 0.0
        %266 = vmatprep.subr.mxu0 0.0
        %267 = vmatpush1.msra.mxu0 0.0
        %268 = vmatprep.subr.mxu0 0.0
        %269 = vmatpush1.msra.mxu0 0.0
        %270 = vmatprep.subr.mxu0 0.0
        %271 = vmatpush1.msra.mxu0 0.0
        %272 = vmatprep.subr.mxu0 0.0
        %273 = vmatpush1.msra.mxu0 0.0
        %274 = vmatprep.subr.mxu0 0.0
        %275 = vmatpush1.msra.mxu0 0.0
        %276 = vmatprep.subr.mxu0 0.0
        %277 = vmatpush1.msra.mxu0 %v237
        %278 = vmatprep.subr.mxu0 0.0
        %279 = vmatpush1.msra.mxu0 %v236
        %280 = vmatprep.subr.mxu0 0.0
        %281 = vmatpush1.msra.mxu0 %v235
        %282 = vmatprep.subr.mxu0 0.0
        %283 = vmatpush1.msra.mxu0 %v234
        %284 = vmatprep.subr.mxu0 0.0
        %285 = vmatpush2.msra.mxu0 0.0
        %286 = vmatprep.subr.mxu0 0.0
        %287 = vmatpush2.msra.mxu0 0.0
        %288 = vmatprep.subr.mxu0 0.0
        %289 = vmatpush2.msra.mxu0 0.0
        %290 = vmatprep.subr.mxu0 0.0
        %291 = vmatpush2.msra.mxu0 0.0
        %292 = vmatprep.subr.mxu0 0.0
        %293 = vmatpush2.msra.mxu0 0.0
        %294 = vmatprep.subr.mxu0 0.0
        %295 = vmatpush2.msra.mxu0 0.0
        %296 = vmatprep.subr.mxu0 0.0
        %297 = vmatpush2.msra.mxu0 0.0
        %298 = vmatprep.subr.mxu0 0.0
        %299 = vmatpush2.msra.mxu0 0.0
        %300 = vmatprep.subr.mxu0 0.0
        %301 = vmatpush2.msra.mxu0 0.0
        %302 = vmatprep.subr.mxu0 0.0
        %303 = vmatpush2.msra.mxu0 0.0
        %304 = vmatprep.subr.mxu0 0.0
        %305 = vmatpush2.msra.mxu0 0.0
        %306 = vmatprep.subr.mxu0 0.0
        %307 = vmatpush2.msra.mxu0 0.0
        %308 = vmatprep.subr.mxu0 0.0
        %309 = vmatpush2.msra.mxu0 0.0
        %310 = vmatprep.subr.mxu0 0.0
        %311 = vmatpush2.msra.mxu0 0.0
        %312 = vmatprep.subr.mxu0 0.0
        %313 = vmatpush2.msra.mxu0 0.0
        %314 = vmatprep.subr.mxu0 0.0
        %315 = vmatpush2.msra.mxu0 0.0
        %316 = vmatprep.mubr.f32.mxu0 0.0
        %317 = vmatmul.mubr.f32.gmra.mxu0 %v247
        %v318 = vpop.f32.mrf.mxu0
        %v319 = vadd.f32 %v243, %v318
        %v320 = vpop.f32.mrf.mxu0
        %321 = vmatprep.mubr.f32.mxu0 0.0
        %322 = vmatmul.mubr.f32.gmra.mxu0 %v250
        %v323 = vpop.f32.mrf.mxu0
        %v324 = vadd.f32 %v243, %v323
        %v325 = vpop.f32.mrf.mxu0
        %326 = vdwg.mxu0
        %v327 = vld [vmem:[#allocation5 + $0x8] sm:$0xff]
        %v328 = vld [vmem:[#allocation5 + $0x28] sm:$0xff]
        %v329 = vld [vmem:[#allocation5 + $0x48] sm:$0xff]
        %v330 = vld [vmem:[#allocation5 + $0x68] sm:$0xff]
        %v331 = vld [vmem:[#allocation7 + $0x1] sm:$0x1]
        %v333 = vlaneseq
        %v334 = vshrl.u32 %v333, 7
        %v335 = vsub.s32 0, %v334
        %v336 = vrot.slane %v331, %v335
        %338 = vmatprep.subr.mxu0 0.0
        %339 = vmatpush1.msra.mxu0 0.0
        %340 = vmatprep.subr.mxu0 0.0
        %341 = vmatpush1.msra.mxu0 0.0
        %342 = vmatprep.subr.mxu0 0.0
        %343 = vmatpush1.msra.mxu0 0.0
        %344 = vmatprep.subr.mxu0 0.0
        %345 = vmatpush1.msra.mxu0 0.0
        %346 = vmatprep.subr.mxu0 0.0
        %347 = vmatpush1.msra.mxu0 0.0
        %348 = vmatprep.subr.mxu0 0.0
        %349 = vmatpush1.msra.mxu0 0.0
        %350 = vmatprep.subr.mxu0 0.0
        %351 = vmatpush1.msra.mxu0 0.0
        %352 = vmatprep.subr.mxu0 0.0
        %353 = vmatpush1.msra.mxu0 0.0
        %354 = vmatprep.subr.mxu0 0.0
        %355 = vmatpush1.msra.mxu0 0.0
        %356 = vmatprep.subr.mxu0 0.0
        %357 = vmatpush1.msra.mxu0 0.0
        %358 = vmatprep.subr.mxu0 0.0
        %359 = vmatpush1.msra.mxu0 0.0
        %360 = vmatprep.subr.mxu0 0.0
        %361 = vmatpush1.msra.mxu0 0.0
        %362 = vmatprep.subr.mxu0 0.0
        %363 = vmatpush1.msra.mxu0 %v330
        %364 = vmatprep.subr.mxu0 0.0
        %365 = vmatpush1.msra.mxu0 %v329
        %366 = vmatprep.subr.mxu0 0.0
        %367 = vmatpush1.msra.mxu0 %v328
        %368 = vmatprep.subr.mxu0 0.0
        %369 = vmatpush1.msra.mxu0 %v327
        %370 = vmatprep.subr.mxu0 0.0
        %371 = vmatpush2.msra.mxu0 0.0
        %372 = vmatprep.subr.mxu0 0.0
        %373 = vmatpush2.msra.mxu0 0.0
        %374 = vmatprep.subr.mxu0 0.0
        %375 = vmatpush2.msra.mxu0 0.0
        %376 = vmatprep.subr.mxu0 0.0
        %377 = vmatpush2.msra.mxu0 0.0
        %378 = vmatprep.subr.mxu0 0.0
        %379 = vmatpush2.msra.mxu0 0.0
        %380 = vmatprep.subr.mxu0 0.0
        %381 = vmatpush2.msra.mxu0 0.0
        %382 = vmatprep.subr.mxu0 0.0
        %383 = vmatpush2.msra.mxu0 0.0
        %384 = vmatprep.subr.mxu0 0.0
        %385 = vmatpush2.msra.mxu0 0.0
        %386 = vmatprep.subr.mxu0 0.0
        %387 = vmatpush2.msra.mxu0 0.0
        %388 = vmatprep.subr.mxu0 0.0
        %389 = vmatpush2.msra.mxu0 0.0
        %390 = vmatprep.subr.mxu0 0.0
        %391 = vmatpush2.msra.mxu0 0.0
        %392 = vmatprep.subr.mxu0 0.0
        %393 = vmatpush2.msra.mxu0 0.0
        %394 = vmatprep.subr.mxu0 0.0
        %395 = vmatpush2.msra.mxu0 0.0
        %396 = vmatprep.subr.mxu0 0.0
        %397 = vmatpush2.msra.mxu0 0.0
        %398 = vmatprep.subr.mxu0 0.0
        %399 = vmatpush2.msra.mxu0 0.0
        %400 = vmatprep.subr.mxu0 0.0
        %401 = vmatpush2.msra.mxu0 0.0
        %402 = vmatprep.mubr.f32.mxu0 0.0
        %403 = vmatmul.mubr.f32.gmra.mxu0 %v247
        %v404 = vpop.f32.mrf.mxu0
        %v405 = vadd.f32 %v336, %v404
        %v406 = vpop.f32.mrf.mxu0
        %407 = vmatprep.mubr.f32.mxu0 0.0
        %408 = vmatmul.mubr.f32.gmra.mxu0 %v250
        %v409 = vpop.f32.mrf.mxu0
        %v410 = vadd.f32 %v336, %v409
        %v411 = vpop.f32.mrf.mxu0
        %412 = vdwg.mxu0
        %v413 = vmax.f32 %v319, %v405
        %v414 = vmax.f32 %v324, %v410
        %v415 = vld [vmem:[#allocation5 + $0x10] sm:$0xff]
        %v416 = vld [vmem:[#allocation5 + $0x30] sm:$0xff]
        %v417 = vld [vmem:[#allocation5 + $0x50] sm:$0xff]
        %v418 = vld [vmem:[#allocation5 + $0x70] sm:$0xff]
        %v419 = vld [vmem:[#allocation7 + $0x2] sm:$0x1]
        %v421 = vlaneseq
        %v422 = vshrl.u32 %v421, 7
        %v423 = vsub.s32 0, %v422
        %v424 = vrot.slane %v419, %v423
        %426 = vmatprep.subr.mxu0 0.0
        %427 = vmatpush1.msra.mxu0 0.0
        %428 = vmatprep.subr.mxu0 0.0
        %429 = vmatpush1.msra.mxu0 0.0
        %430 = vmatprep.subr.mxu0 0.0
        %431 = vmatpush1.msra.mxu0 0.0
        %432 = vmatprep.subr.mxu0 0.0
        %433 = vmatpush1.msra.mxu0 0.0
        %434 = vmatprep.subr.mxu0 0.0
        %435 = vmatpush1.msra.mxu0 0.0
        %436 = vmatprep.subr.mxu0 0.0
        %437 = vmatpush1.msra.mxu0 0.0
        %438 = vmatprep.subr.mxu0 0.0
        %439 = vmatpush1.msra.mxu0 0.0
        %440 = vmatprep.subr.mxu0 0.0
        %441 = vmatpush1.msra.mxu0 0.0
        %442 = vmatprep.subr.mxu0 0.0
        %443 = vmatpush1.msra.mxu0 0.0
        %444 = vmatprep.subr.mxu0 0.0
        %445 = vmatpush1.msra.mxu0 0.0
        %446 = vmatprep.subr.mxu0 0.0
        %447 = vmatpush1.msra.mxu0 0.0
        %448 = vmatprep.subr.mxu0 0.0
        %449 = vmatpush1.msra.mxu0 0.0
        %450 = vmatprep.subr.mxu0 0.0
        %451 = vmatpush1.msra.mxu0 %v418
        %452 = vmatprep.subr.mxu0 0.0
        %453 = vmatpush1.msra.mxu0 %v417
        %454 = vmatprep.subr.mxu0 0.0
        %455 = vmatpush1.msra.mxu0 %v416
        %456 = vmatprep.subr.mxu0 0.0
        %457 = vmatpush1.msra.mxu0 %v415
        %458 = vmatprep.subr.mxu0 0.0
        %459 = vmatpush2.msra.mxu0 0.0
        %460 = vmatprep.subr.mxu0 0.0
        %461 = vmatpush2.msra.mxu0 0.0
        %462 = vmatprep.subr.mxu0 0.0
        %463 = vmatpush2.msra.mxu0 0.0
        %464 = vmatprep.subr.mxu0 0.0
        %465 = vmatpush2.msra.mxu0 0.0
        %466 = vmatprep.subr.mxu0 0.0
        %467 = vmatpush2.msra.mxu0 0.0
        %468 = vmatprep.subr.mxu0 0.0
        %469 = vmatpush2.msra.mxu0 0.0
        %470 = vmatprep.subr.mxu0 0.0
        %471 = vmatpush2.msra.mxu0 0.0
        %472 = vmatprep.subr.mxu0 0.0
        %473 = vmatpush2.msra.mxu0 0.0
        %474 = vmatprep.subr.mxu0 0.0
        %475 = vmatpush2.msra.mxu0 0.0
        %476 = vmatprep.subr.mxu0 0.0
        %477 = vmatpush2.msra.mxu0 0.0
        %478 = vmatprep.subr.mxu0 0.0
        %479 = vmatpush2.msra.mxu0 0.0
        %480 = vmatprep.subr.mxu0 0.0
        %481 = vmatpush2.msra.mxu0 0.0
        %482 = vmatprep.subr.mxu0 0.0
        %483 = vmatpush2.msra.mxu0 0.0
        %484 = vmatprep.subr.mxu0 0.0
        %485 = vmatpush2.msra.mxu0 0.0
        %486 = vmatprep.subr.mxu0 0.0
        %487 = vmatpush2.msra.mxu0 0.0
        %488 = vmatprep.subr.mxu0 0.0
        %489 = vmatpush2.msra.mxu0 0.0
        %490 = vmatprep.mubr.f32.mxu0 0.0
        %491 = vmatmul.mubr.f32.gmra.mxu0 %v247
        %v492 = vpop.f32.mrf.mxu0
        %v493 = vadd.f32 %v424, %v492
        %v494 = vpop.f32.mrf.mxu0
        %495 = vmatprep.mubr.f32.mxu0 0.0
        %496 = vmatmul.mubr.f32.gmra.mxu0 %v250
        %v497 = vpop.f32.mrf.mxu0
        %v498 = vadd.f32 %v424, %v497
        %v499 = vpop.f32.mrf.mxu0
        %500 = vdwg.mxu0
        %v501 = vmax.f32 %v413, %v493
        %v502 = vmax.f32 %v414, %v498
        %v503 = vld [vmem:[#allocation5 + $0x18] sm:$0xff]
        %v504 = vld [vmem:[#allocation5 + $0x38] sm:$0xff]
        %v505 = vld [vmem:[#allocation5 + $0x58] sm:$0xff]
        %v506 = vld [vmem:[#allocation5 + $0x78] sm:$0xff]
        %v507 = vld [vmem:[#allocation7 + $0x3] sm:$0x1]
        %v509 = vlaneseq
        %v510 = vshrl.u32 %v509, 7
        %v511 = vsub.s32 0, %v510
        %v512 = vrot.slane %v507, %v511
        %514 = vmatprep.subr.mxu0 0.0
        %515 = vmatpush1.msra.mxu0 0.0
        %516 = vmatprep.subr.mxu0 0.0
        %517 = vmatpush1.msra.mxu0 0.0
        %518 = vmatprep.subr.mxu0 0.0
        %519 = vmatpush1.msra.mxu0 0.0
        %520 = vmatprep.subr.mxu0 0.0
        %521 = vmatpush1.msra.mxu0 0.0
        %522 = vmatprep.subr.mxu0 0.0
        %523 = vmatpush1.msra.mxu0 0.0
        %524 = vmatprep.subr.mxu0 0.0
        %525 = vmatpush1.msra.mxu0 0.0
        %526 = vmatprep.subr.mxu0 0.0
        %527 = vmatpush1.msra.mxu0 0.0
        %528 = vmatprep.subr.mxu0 0.0
        %529 = vmatpush1.msra.mxu0 0.0
        %530 = vmatprep.subr.mxu0 0.0
        %531 = vmatpush1.msra.mxu0 0.0
        %532 = vmatprep.subr.mxu0 0.0
        %533 = vmatpush1.msra.mxu0 0.0
        %534 = vmatprep.subr.mxu0 0.0
        %535 = vmatpush1.msra.mxu0 0.0
        %536 = vmatprep.subr.mxu0 0.0
        %537 = vmatpush1.msra.mxu0 0.0
        %538 = vmatprep.subr.mxu0 0.0
        %539 = vmatpush1.msra.mxu0 %v506
        %540 = vmatprep.subr.mxu0 0.0
        %541 = vmatpush1.msra.mxu0 %v505
        %542 = vmatprep.subr.mxu0 0.0
        %543 = vmatpush1.msra.mxu0 %v504
        %544 = vmatprep.subr.mxu0 0.0
        %545 = vmatpush1.msra.mxu0 %v503
        %546 = vmatprep.subr.mxu0 0.0
        %547 = vmatpush2.msra.mxu0 0.0
        %548 = vmatprep.subr.mxu0 0.0
        %549 = vmatpush2.msra.mxu0 0.0
        %550 = vmatprep.subr.mxu0 0.0
        %551 = vmatpush2.msra.mxu0 0.0
        %552 = vmatprep.subr.mxu0 0.0
        %553 = vmatpush2.msra.mxu0 0.0
        %554 = vmatprep.subr.mxu0 0.0
        %555 = vmatpush2.msra.mxu0 0.0
        %556 = vmatprep.subr.mxu0 0.0
        %557 = vmatpush2.msra.mxu0 0.0
        %558 = vmatprep.subr.mxu0 0.0
        %559 = vmatpush2.msra.mxu0 0.0
        %560 = vmatprep.subr.mxu0 0.0
        %561 = vmatpush2.msra.mxu0 0.0
        %562 = vmatprep.subr.mxu0 0.0
        %563 = vmatpush2.msra.mxu0 0.0
        %564 = vmatprep.subr.mxu0 0.0
        %565 = vmatpush2.msra.mxu0 0.0
        %566 = vmatprep.subr.mxu0 0.0
        %567 = vmatpush2.msra.mxu0 0.0
        %568 = vmatprep.subr.mxu0 0.0
        %569 = vmatpush2.msra.mxu0 0.0
        %570 = vmatprep.subr.mxu0 0.0
        %571 = vmatpush2.msra.mxu0 0.0
        %572 = vmatprep.subr.mxu0 0.0
        %573 = vmatpush2.msra.mxu0 0.0
        %574 = vmatprep.subr.mxu0 0.0
        %575 = vmatpush2.msra.mxu0 0.0
        %576 = vmatprep.subr.mxu0 0.0
        %577 = vmatpush2.msra.mxu0 0.0
        %578 = vmatprep.mubr.f32.mxu0 0.0
        %579 = vmatmul.mubr.f32.gmra.mxu0 %v247
        %v580 = vpop.f32.mrf.mxu0
        %v581 = vadd.f32 %v512, %v580
        %v582 = vpop.f32.mrf.mxu0
        %583 = vmatprep.mubr.f32.mxu0 0.0
        %584 = vmatmul.mubr.f32.gmra.mxu0 %v250
        %v585 = vpop.f32.mrf.mxu0
        %v586 = vadd.f32 %v512, %v585
        %v587 = vpop.f32.mrf.mxu0
        %588 = vdwg.mxu0
        %v589 = vmax.f32 %v501, %v581
        %v590 = vmax.f32 %v502, %v586
        %591 = vst [vmem:[%s221] sm:$0xff] %v589
        %592 = vst [vmem:[%s221 + $0x8] sm:$0xff] %v590
        %s593 = sand.u32 %s97, 1
        %s594 = scalar_lea.sflag [#allocation4], %s593
        %s595 = sand.u32 %s97, 1
        %s596 = smul.addr %s595, 16
        %s597 = scalar_lea.vmem [#allocation8], %s596
        // Predicated region
        $region45: #{tpu_custom_call.1} parent=31 // pred_check
          %p598 = pneg %p107
        $region46: #{tpu_custom_call.1} parent=31 // pred_check_branch
          %600 = sbr.rel (%p598) target = $region48
        $region47: #{tpu_custom_call.1} parent=31 // pred_region
          %s601 = smul.u32 2, %s21
          %s602 = ssub.s32 3, %s601
          %p603 = scmp.lt.s32.totalorder %s602, 2
          %s604 = scalar_select %p603, %s602, 2
          %s605 = smul.u32 128, %s604
          %s607 = ssub.s32 256, %s605
          %608 = vsyncadd %s594, %s607
          %p609 = scmp.ne.s32.totalorder 0, %s605
          %s610 = smul.addr %s601, 128
          %s611 = scalar_lea.hbm %s3, %s610
          %s612 = smul.u32 8, %s604
          %s613 = sshll.u32 %s597, 4
          %s614 = int_to_ptr.vmem [resolvable:$true] %s613
          %s615 = sshll.u32 %s612, 4
          %619 = dma.vmem_to_hbm [thread:$0]  (%p609), %s614, %s615, %s611, %s594, 128, 128, 8
        $region48: #{tpu_custom_call.1} parent=31 // pred_fallthru
          _
      $region32: #{tpu_custom_call.1} parent=5 // pred_fallthru
        _
      %p620 = scmp.le.s32.totalorder 2, %s16
      // Predicated region
      $region49: #{tpu_custom_call.1} parent=5 // pred_check
        %p621 = pneg %p620
      $region50: #{tpu_custom_call.1} parent=5 // pred_check_branch
        %623 = sbr.rel (%p621) target = $region52
      $region51: #{tpu_custom_call.1} parent=5 // pred_region
        %s624 = ssub.s32 %s16, 2
        // Predicated region
        $region53: #{tpu_custom_call.1} parent=51 // pred_check
          %p625 = pneg %p113
        $region54: #{tpu_custom_call.1} parent=51 // pred_check_branch
          %627 = sbr.rel (%p625) target = $region56
        $region55: #{tpu_custom_call.1} parent=51 // pred_region
          %s628 = sand.u32 %s98, 1
          %s629 = scalar_lea.sflag [#allocation4], %s628
          %s630 = sand.u32 %s98, 1
          %s631 = smul.addr %s630, 16
          %s632 = scalar_lea.vmem [#allocation8], %s631
          %633 = dma.done %s629, 256
        $region56: #{tpu_custom_call.1} parent=51 // pred_fallthru
          _
      $region52: #{tpu_custom_call.1} parent=5 // pred_fallthru
        _
    $region6: #{tpu_custom_call.1} parent=1 // loop_footer
      %s20 = sadd.s32 1, %s16
    $region7: #{tpu_custom_call.1} parent=1 // loop_footer_branch
      %15 = sbr.rel target = $region3
    $region8: #{tpu_custom_call.1} parent=1 // loop_exit
      _
    %634 = vsyncpa [#allocation3], 1
    %s635 = scalar_lea.sflag [#allocation3], 1
    %636 = vsyncpa %s635, 1
    %637 = vsyncpa [#allocation6], 1
    %638 = vsyncpa [#allocation4], 1
    %s639 = scalar_lea.sflag [#allocation4], 1
    %640 = vsyncpa %s639, 1

</llo_original>
